<compile_context>
chip_gen: v6e
topology: v6e:2x2x1
jax: 0.10.0
libtpu: 0.0.40
codegen_flags: <defaults>
</compile_context>

<pallas_src>
import jax
import jax.numpy as jnp
from jax import lax
from jax.experimental import pallas as pl
from jax.experimental.pallas import tpu as pltpu


def _mlp_kernel(x_ref, w1_ref, b1_ref, w2_ref, b2_ref, w3t_ref, b3_ref, o_ref):
    # fc1 + ReLU   (bf16 operands, f32 accumulate). astype is a no-op when the
    # caller already feeds bf16 x (the fast path).
    h1 = jnp.dot(x_ref[...].astype(jnp.bfloat16), w1_ref[...],
                 preferred_element_type=jnp.float32)
    h1 = jnp.maximum(h1 + b1_ref[...], 0.0)

    # fc2 + ReLU
    h2 = jnp.dot(h1.astype(jnp.bfloat16), w2_ref[...],
                 preferred_element_type=jnp.float32)
    h2 = jnp.maximum(h2 + b2_ref[...], 0.0)

    # fc3 as a lane-dense (1, B_TILE) contraction:
    #   w3t (1, 64) contracted with h2 (B_TILE, 64) over the hidden dim.
    z = lax.dot_general(w3t_ref[...], h2.astype(jnp.bfloat16),
                        dimension_numbers=(((1,), (1,)), ((), ())),
                        preferred_element_type=jnp.float32)      # (1, B_TILE)
    z = z + b3_ref[...]                                          # (1,1) bcast

    # stable sigmoid (avoids inf from exp(-z) for very negative z)
    o_ref[...] = jax.nn.sigmoid(z)


def _round_up(v, m):
    return (v + m - 1) // m * m


def heuristic_nn_forward(x, params, *, b_tile=8192, vmem_limit_bytes=None):
    """x: (B, 48), float32 or (preferred) bfloat16. Returns (B, 1) float32."""
    w1, b1, w2, b2, w3, b3 = params
    B, F = x.shape
    H = w1.shape[1]

    # Clamp the tile: keep >= 2 tiles whenever B allows it (v7x has 2 TCs
    # sharing HBM) and keep it a multiple of 128 so the lane-dense output
    # block stays unmasked. No jnp.pad: the grid is non-divisible and Pallas
    # masks the last block's input reads / output writeback.
    b_tile = max(128, min(b_tile, _round_up(pl.cdiv(B, 2), 128)))
    n_tiles = pl.cdiv(B, b_tile)

    if vmem_limit_bytes is None:
        # ~2-3 KiB of lane-padded VMEM per batch row (double-buffered bf16 x
        # plus f32/bf16 hidden activations) + fixed headroom; capped at 48 MiB
        # to leave room under v7x's 64 MiB physical VMEM. Explicit because
        # v5e's default scoped limit is only 16 MiB.
        vmem_limit_bytes = min(48 << 20, b_tile * 3 * 1024 + (8 << 20))

    # bf16 MXU operands (f32 accumulate inside the kernel); biases stay f32.
    w1b = w1.astype(jnp.bfloat16)
    w2b = w2.astype(jnp.bfloat16)
    w3t = w3.T.astype(jnp.bfloat16)                # (1, H) row vector

    flops = 2 * B * (F * H + H * H + H)
    bytes_accessed = (B * F * x.dtype.itemsize + B * 4
                      + (F * H + H * H + H) * 2 + (2 * H + 1) * 4)

    out = pl.pallas_call(
        _mlp_kernel,
        out_shape=jax.ShapeDtypeStruct((1, B), jnp.float32),
        grid_spec=pltpu.PrefetchScalarGridSpec(
            num_scalar_prefetch=0,
            grid=(n_tiles,),
            in_specs=[
                # x: one batch tile per grid step (double-buffered by Pallas).
                # TODO(synk): add pipeline_mode=pl.Buffered(3) here if xprof
                # still shows exposed copy-waits on v7x's fast HBM.
                pl.BlockSpec((b_tile, F), lambda i: (i, 0)),
                # weights / biases: whole arrays, VMEM-resident across steps
                pl.BlockSpec((F, H), lambda i: (0, 0)),
                pl.BlockSpec((1, H), lambda i: (0, 0)),
                pl.BlockSpec((H, H), lambda i: (0, 0)),
                pl.BlockSpec((1, H), lambda i: (0, 0)),
                pl.BlockSpec((1, H), lambda i: (0, 0)),
                pl.BlockSpec((1, 1), lambda i: (0, 0)),
            ],
            # lane-dense output: batch on the lane (last) axis; the last
            # block's writeback is masked when B % b_tile != 0.
            out_specs=pl.BlockSpec((1, b_tile), lambda i: (0, i)),
        ),
        compiler_params=pltpu.CompilerParams(
            dimension_semantics=("parallel",),       # shard batch across TCs
            vmem_limit_bytes=vmem_limit_bytes),
        cost_estimate=pl.CostEstimate(
            flops=flops, transcendentals=B, bytes_accessed=bytes_accessed),
    )(x, w1b, b1, w2b, b2, w3t, b3)

    return out.reshape(B, 1)


def init_params(key, input_size=48, hidden_size=64):
    """Deterministic synthetic init (shapes match HeuristicNN.__init__)."""
    ks = jax.random.split(key, 6)
    # weights stored as (in, out); biases as (1, out) for clean broadcasting.
    w1 = jax.random.normal(ks[0], (input_size, hidden_size), jnp.float32) * 0.1
    b1 = jax.random.normal(ks[1], (1, hidden_size), jnp.float32) * 0.1
    w2 = jax.random.normal(ks[2], (hidden_size, hidden_size), jnp.float32) * 0.1
    b2 = jax.random.normal(ks[3], (1, hidden_size), jnp.float32) * 0.1
    w3 = jax.random.normal(ks[4], (hidden_size, 1), jnp.float32) * 0.1
    b3 = jax.random.normal(ks[5], (1, 1), jnp.float32) * 0.1
    return (w1, b1, w2, b2, w3, b3)


def reference_forward(x, params):
    """Plain-JAX f32 reference mirroring the PyTorch forward."""
    w1, b1, w2, b2, w3, b3 = params
    h = jnp.maximum(x @ w1 + b1, 0.0)
    h = jnp.maximum(h @ w2 + b2, 0.0)
    return jax.nn.sigmoid(h @ w3 + b3)


if __name__ == "__main__":
    key = jax.random.PRNGKey(0)
    k_x, k_p = jax.random.split(key)

    # B deliberately not tile-aligned -> exercises the non-divisible grid and
    # the masked last block (auto-clamp gives 2 tiles of 256 rows).
    B, INPUT, HIDDEN = 300, 48, 64
    x = jax.random.normal(k_x, (B, INPUT), jnp.float32)
    params = init_params(k_p, INPUT, HIDDEN)

    # feed x as bf16 ("produce bf16 upstream"): halves the dominant HBM stream
    x_bf16 = x.astype(jnp.bfloat16)

    out = heuristic_nn_forward(x_bf16, params)
    out = jax.block_until_ready(out)

    # f32 reference from the same (bf16-quantized) input so the only error
    # source is the bf16 MXU operands with f32 accumulation.
    ref = reference_forward(x_bf16.astype(jnp.float32), params)
    assert out.shape == (B, 1), out.shape
    assert jnp.allclose(out, ref, atol=1e-2, rtol=0.0), (
        f"max err {jnp.max(jnp.abs(out - ref))}")

    print("KERNEL_OK")
</pallas_src>

<mosaic_0001>
module attributes {stable_mosaic.version = 11 : i64} {
  func.func @_mlp_kernel(%arg0: i32, %arg1: memref<256x48xbf16, #tpu.memory_space<vmem>>, %arg2: memref<48x64xbf16, #tpu.memory_space<vmem>>, %arg3: memref<1x64xf32, #tpu.memory_space<vmem>>, %arg4: memref<64x64xbf16, #tpu.memory_space<vmem>>, %arg5: memref<1x64xf32, #tpu.memory_space<vmem>>, %arg6: memref<1x64xbf16, #tpu.memory_space<vmem>>, %arg7: memref<1x1xf32, #tpu.memory_space<vmem>>, %arg8: memref<1x256xf32, #tpu.memory_space<vmem>>) attributes {dimension_semantics = [#tpu.dimension_semantics<parallel>], iteration_bounds = array<i64: 2>, scalar_prefetch = 0 : i64, scratch_operands = 0 : i64, tpu.core_type = #tpu.core_type<tc>, window_params = [{transform_indices = @transform_0, window_bounds = array<i64: 256, 48>}, {pipeline_mode = #tpu.pipeline_mode<synchronous>, transform_indices = @transform_1, window_bounds = array<i64: 48, 64>}, {pipeline_mode = #tpu.pipeline_mode<synchronous>, transform_indices = @transform_2, window_bounds = array<i64: 1, 64>}, {pipeline_mode = #tpu.pipeline_mode<synchronous>, transform_indices = @transform_3, window_bounds = array<i64: 64, 64>}, {pipeline_mode = #tpu.pipeline_mode<synchronous>, transform_indices = @transform_4, window_bounds = array<i64: 1, 64>}, {pipeline_mode = #tpu.pipeline_mode<synchronous>, transform_indices = @transform_5, window_bounds = array<i64: 1, 64>}, {pipeline_mode = #tpu.pipeline_mode<synchronous>, transform_indices = @transform_6, window_bounds = array<i64: 1, 1>}, {transform_indices = @transform_7, window_bounds = array<i64: 1, 256>}]} {
    %c0 = arith.constant 0 : index
    %c0_0 = arith.constant 0 : index
    %0 = vector.load %arg1[%c0, %c0_0] : memref<256x48xbf16, #tpu.memory_space<vmem>>, vector<256x48xbf16>
    %c0_1 = arith.constant 0 : index
    %c0_2 = arith.constant 0 : index
    %1 = vector.load %arg2[%c0_1, %c0_2] : memref<48x64xbf16, #tpu.memory_space<vmem>>, vector<48x64xbf16>
    %cst = arith.constant dense<0.000000e+00> : vector<256x64xf32>
    %2 = tpu.matmul %0, %1, %cst {dimension_numbers = #tpu.dot_dimension_numbers<[1], [0], [0], [1], [0, 0, 1, 1], [], []>} : vector<256x48xbf16>, vector<48x64xbf16>, vector<256x64xf32> -> vector<256x64xf32>
    %c0_3 = arith.constant 0 : index
    %c0_4 = arith.constant 0 : index
    %3 = vector.load %arg3[%c0_3, %c0_4] : memref<1x64xf32, #tpu.memory_space<vmem>>, vector<1x64xf32>
    %4 = vector.broadcast %3 : vector<1x64xf32> to vector<256x64xf32>
    %5 = arith.addf %2, %4 : vector<256x64xf32>
    %cst_5 = arith.constant 0.000000e+00 : f32
    %6 = vector.broadcast %cst_5 : f32 to vector<256x64xf32>
    %7 = arith.maximumf %5, %6 : vector<256x64xf32>
    %8 = arith.truncf %7 : vector<256x64xf32> to vector<256x64xbf16>
    %c0_6 = arith.constant 0 : index
    %c0_7 = arith.constant 0 : index
    %9 = vector.load %arg4[%c0_6, %c0_7] : memref<64x64xbf16, #tpu.memory_space<vmem>>, vector<64x64xbf16>
    %cst_8 = arith.constant dense<0.000000e+00> : vector<256x64xf32>
    %10 = tpu.matmul %8, %9, %cst_8 {dimension_numbers = #tpu.dot_dimension_numbers<[1], [0], [0], [1], [0, 0, 1, 1], [], []>} : vector<256x64xbf16>, vector<64x64xbf16>, vector<256x64xf32> -> vector<256x64xf32>
    %c0_9 = arith.constant 0 : index
    %c0_10 = arith.constant 0 : index
    %11 = vector.load %arg5[%c0_9, %c0_10] : memref<1x64xf32, #tpu.memory_space<vmem>>, vector<1x64xf32>
    %12 = vector.broadcast %11 : vector<1x64xf32> to vector<256x64xf32>
    %13 = arith.addf %10, %12 : vector<256x64xf32>
    %cst_11 = arith.constant 0.000000e+00 : f32
    %14 = vector.broadcast %cst_11 : f32 to vector<256x64xf32>
    %15 = arith.maximumf %13, %14 : vector<256x64xf32>
    %c0_12 = arith.constant 0 : index
    %c0_13 = arith.constant 0 : index
    %16 = vector.load %arg6[%c0_12, %c0_13] : memref<1x64xbf16, #tpu.memory_space<vmem>>, vector<1x64xbf16>
    %17 = arith.truncf %15 : vector<256x64xf32> to vector<256x64xbf16>
    %cst_14 = arith.constant dense<0.000000e+00> : vector<1x256xf32>
    %18 = tpu.matmul %16, %17, %cst_14 {dimension_numbers = #tpu.dot_dimension_numbers<[1], [1], [0], [0], [0, 0, 1, 0], [], []>} : vector<1x64xbf16>, vector<256x64xbf16>, vector<1x256xf32> -> vector<1x256xf32>
    %c0_15 = arith.constant 0 : index
    %c0_16 = arith.constant 0 : index
    %19 = vector.load %arg7[%c0_15, %c0_16] : memref<1x1xf32, #tpu.memory_space<vmem>>, vector<1x1xf32>
    %20 = vector.broadcast %19 : vector<1x1xf32> to vector<1x256xf32>
    %21 = arith.addf %18, %20 : vector<1x256xf32>
    %22 = arith.negf %21 : vector<1x256xf32>
    %23 = math.exp %22 : vector<1x256xf32>
    %cst_17 = arith.constant 1.000000e+00 : f32
    %24 = vector.broadcast %cst_17 : f32 to vector<1x256xf32>
    %25 = arith.addf %24, %23 : vector<1x256xf32>
    %26 = arith.divf %24, %25 : vector<1x256xf32>
    %c0_18 = arith.constant 0 : index
    %c0_19 = arith.constant 0 : index
    %27 = vector.load %arg8[%c0_18, %c0_19] : memref<1x256xf32, #tpu.memory_space<vmem>>, vector<1x256xf32>
    tpu.vector_store %arg8[%c0_18, %c0_19], %26 {strides = array<i32>} : memref<1x256xf32, #tpu.memory_space<vmem>>, vector<1x256xf32>,
    return
  }
  func.func @transform_0(%arg0: i32) -> (i32, i32) {
    %c0_i32 = arith.constant 0 : i32
    %c0_i32_0 = arith.constant 0 : i32
    return %arg0, %c0_i32 : i32, i32
  }
  func.func @transform_1(%arg0: i32) -> (i32, i32) {
    %c0_i32 = arith.constant 0 : i32
    %c0_i32_0 = arith.constant 0 : i32
    %c0_i32_1 = arith.constant 0 : i32
    return %c0_i32, %c0_i32_0 : i32, i32
  }
  func.func @transform_2(%arg0: i32) -> (i32, i32) {
    %c0_i32 = arith.constant 0 : i32
    %c0_i32_0 = arith.constant 0 : i32
    %c0_i32_1 = arith.constant 0 : i32
    return %c0_i32, %c0_i32_0 : i32, i32
  }
  func.func @transform_3(%arg0: i32) -> (i32, i32) {
    %c0_i32 = arith.constant 0 : i32
    %c0_i32_0 = arith.constant 0 : i32
    %c0_i32_1 = arith.constant 0 : i32
    return %c0_i32, %c0_i32_0 : i32, i32
  }
  func.func @transform_4(%arg0: i32) -> (i32, i32) {
    %c0_i32 = arith.constant 0 : i32
    %c0_i32_0 = arith.constant 0 : i32
    %c0_i32_1 = arith.constant 0 : i32
    return %c0_i32, %c0_i32_0 : i32, i32
  }
  func.func @transform_5(%arg0: i32) -> (i32, i32) {
    %c0_i32 = arith.constant 0 : i32
    %c0_i32_0 = arith.constant 0 : i32
    %c0_i32_1 = arith.constant 0 : i32
    return %c0_i32, %c0_i32_0 : i32, i32
  }
  func.func @transform_6(%arg0: i32) -> (i32, i32) {
    %c0_i32 = arith.constant 0 : i32
    %c0_i32_0 = arith.constant 0 : i32
    %c0_i32_1 = arith.constant 0 : i32
    return %c0_i32, %c0_i32_0 : i32, i32
  }
  func.func @transform_7(%arg0: i32) -> (i32, i32) {
    %c0_i32 = arith.constant 0 : i32
    %c0_i32_0 = arith.constant 0 : i32
    return %c0_i32, %arg0 : i32, i32
  }
}

</mosaic_0001>

<llo_original>
// kernel: tpu_custom_call.1
$region0: #{tpu_custom_call.1}
  #allocation0 [shape = 'u32[]', space=smem, size = 0x4, offset = 0x4, fixed_abs, tag = 'smem constant byte address 0x4 - core index']
  #allocation1 [shape = 'u32[144,128]{1,0:T(1,128)}', space=vmem, size = 0x12000, scoped, tag = 'internal scratch']
  #allocation2 [shape = 'f32[1,1]{1,0:T(1,128)S(1)}', space=vmem, size = 0x200, scoped, tag = 'scoped memory for tpu_custom_call.1']
  %s0 = inlined_call_operand.vmem [shape: bf16[300,48], index: 0, kind: input, shape index: {}]
  %s1 = inlined_call_operand.vmem [shape: bf16[48,64], index: 1, kind: input, shape index: {}]
  %s2 = inlined_call_operand.vmem [shape: f32[1,64], index: 2, kind: input, shape index: {}]
  %s3 = inlined_call_operand.vmem [shape: bf16[64,64], index: 3, kind: input, shape index: {}]
  %s4 = inlined_call_operand.vmem [shape: f32[1,64], index: 4, kind: input, shape index: {}]
  %s5 = inlined_call_operand.vmem [shape: bf16[1,64], index: 5, kind: input, shape index: {}]
  %s6 = inlined_call_operand.<no memory space> [shape: f32[1,1], index: 6, kind: input, shape index: {}]
  %s7 = inlined_call_operand.hbm [shape: f32[1,300], index: 7, kind: output, shape index: {}]
  %s8 = sld [smem:[#allocation0]]
  $region61: #{tpu_custom_call.1} parent=0
    _
  %s10 = ssub.s32 1, %s8
  %s11 = scalar_select 0, %s10, %s8
  %v12 = vstv %s6
  %13 = vst [vmem:[#allocation2] sm:$0x1] %v12
  $region1: #{tpu_custom_call.1} parent=0
    #allocation3 [shape = 'u8[2048]{0}', space=vmem, size = 0x800, scoped, tag = 'output window, operand 0']
    #allocation4 [shape = 's32[2]{0}', space=sflag, size = 0x8, scoped, tag = 'scoped memory for tpu_custom_call.1']
    %14 = vsyncpa [#allocation4], 0
    %s15 = scalar_lea.sflag [#allocation4], 1
    %16 = vsyncpa %s15, 0
    loop: start=0, step=1, limit=4
    $region2: #{tpu_custom_call.1} parent=1 // loop_pre_header
      _
    $region3: #{tpu_custom_call.1} parent=1 // loop_header
      %s18 = sphi 0, %s22
      %p19 = scmp.ge.s32.totalorder %s18, 4
      %s28 = sphi 0, %s30
      %s31 = sphi 0, %s28
      %s32 = sphi 0, %s31
      %s48 = sphi 0, %s32
      %s52 = sphi 0, %s52
      %s54 = sphi 0, %s52
      %s55 = sphi 0, %s54
      %s69 = sphi 0, %s55
      %s73 = sphi 0, %s73
      %s75 = sphi 0, %s73
      %s76 = sphi 0, %s75
      %s90 = sphi 0, %s76
      %s94 = sphi 0, %s94
      %s96 = sphi 0, %s94
      %s97 = sphi 0, %s96
      %s111 = sphi 0, %s97
      %s115 = sphi 0, %s115
      %s117 = sphi 0, %s115
      %s118 = sphi 0, %s117
      %s132 = sphi 0, %s118
      %s136 = sphi 0, %s136
      %s138 = sphi 0, %s136
      %s139 = sphi 0, %s138
      %s153 = sphi 0, %s139
      %s157 = sphi 0, %s157
      %s159 = sphi 0, %s157
      %s160 = sphi 0, %s159
      %s174 = sphi 0, %s160
      %s180 = sphi 0, %s182
      %s183 = sphi 0, %s180
      %s184 = sphi 0, %s183
      %s200 = sphi 0, %s184
    $region4: #{tpu_custom_call.1} parent=1 // loop_header_branch
      %21 = sbr.rel (%p19) target = $region8
    $region5: #{tpu_custom_call.1} parent=1 // loop_body
      %s23 = ssub.s32 %s18, 1
      %s24 = ssub.s32 %s18, 2
      %s25 = sadd.s32 %s18, 1
      %s26 = ssub.s32 %s18, %s25
      %p27 = scmp.eq.s32.totalorder %s26, 0
      %s29 = sadd.s32 %s28, 1
      %s30 = scalar_select %p27, %s28, %s29
      %p33 = pneg %p27
      %p34 = scmp.eq.s32.totalorder %s18, 1
      %p35 = por %p33, %p34
      %p36 = scmp.ne.s32.totalorder %s28, %s31
      %p37 = scmp.eq.s32.totalorder %s18, 0
      %p38 = por %p36, %p37
      %p39 = scmp.ne.s32.totalorder %s28, %s31
      %p40 = scmp.eq.s32.totalorder %s23, 1
      %p41 = por %p39, %p40
      %p42 = scmp.ne.s32.totalorder %s31, %s32
      %p43 = scmp.eq.s32.totalorder %s23, 0
      %p44 = por %p42, %p43
      %p45 = scmp.ne.s32.totalorder %s31, %s32
      %p46 = scmp.eq.s32.totalorder %s24, 1
      %p47 = por %p45, %p46
      %p49 = scmp.ne.s32.totalorder %s32, %s48
      %p50 = scmp.eq.s32.totalorder %s24, 0
      %p51 = por %p49, %p50
      %s53 = sadd.s32 %s52, 1
      %p56 = scmp.eq.s32.totalorder %s18, 1
      %p57 = scmp.ne.s32.totalorder %s52, %s54
      %p58 = scmp.eq.s32.totalorder %s18, 0
      %p59 = por %p57, %p58
      %p60 = scmp.ne.s32.totalorder %s52, %s54
      %p61 = scmp.eq.s32.totalorder %s23, 1
      %p62 = por %p60, %p61
      %p63 = scmp.ne.s32.totalorder %s54, %s55
      %p64 = scmp.eq.s32.totalorder %s23, 0
      %p65 = por %p63, %p64
      %p66 = scmp.ne.s32.totalorder %s54, %s55
      %p67 = scmp.eq.s32.totalorder %s24, 1
      %p68 = por %p66, %p67
      %p70 = scmp.ne.s32.totalorder %s55, %s69
      %p71 = scmp.eq.s32.totalorder %s24, 0
      %p72 = por %p70, %p71
      %s74 = sadd.s32 %s73, 1
      %p77 = scmp.eq.s32.totalorder %s18, 1
      %p78 = scmp.ne.s32.totalorder %s73, %s75
      %p79 = scmp.eq.s32.totalorder %s18, 0
      %p80 = por %p78, %p79
      %p81 = scmp.ne.s32.totalorder %s73, %s75
      %p82 = scmp.eq.s32.totalorder %s23, 1
      %p83 = por %p81, %p82
      %p84 = scmp.ne.s32.totalorder %s75, %s76
      %p85 = scmp.eq.s32.totalorder %s23, 0
      %p86 = por %p84, %p85
      %p87 = scmp.ne.s32.totalorder %s75, %s76
      %p88 = scmp.eq.s32.totalorder %s24, 1
      %p89 = por %p87, %p88
      %p91 = scmp.ne.s32.totalorder %s76, %s90
      %p92 = scmp.eq.s32.totalorder %s24, 0
      %p93 = por %p91, %p92
      %s95 = sadd.s32 %s94, 1
      %p98 = scmp.eq.s32.totalorder %s18, 1
      %p99 = scmp.ne.s32.totalorder %s94, %s96
      %p100 = scmp.eq.s32.totalorder %s18, 0
      %p101 = por %p99, %p100
      %p102 = scmp.ne.s32.totalorder %s94, %s96
      %p103 = scmp.eq.s32.totalorder %s23, 1
      %p104 = por %p102, %p103
      %p105 = scmp.ne.s32.totalorder %s96, %s97
      %p106 = scmp.eq.s32.totalorder %s23, 0
      %p107 = por %p105, %p106
      %p108 = scmp.ne.s32.totalorder %s96, %s97
      %p109 = scmp.eq.s32.totalorder %s24, 1
      %p110 = por %p108, %p109
      %p112 = scmp.ne.s32.totalorder %s97, %s111
      %p113 = scmp.eq.s32.totalorder %s24, 0
      %p114 = por %p112, %p113
      %s116 = sadd.s32 %s115, 1
      %p119 = scmp.eq.s32.totalorder %s18, 1
      %p120 = scmp.ne.s32.totalorder %s115, %s117
      %p121 = scmp.eq.s32.totalorder %s18, 0
      %p122 = por %p120, %p121
      %p123 = scmp.ne.s32.totalorder %s115, %s117
      %p124 = scmp.eq.s32.totalorder %s23, 1
      %p125 = por %p123, %p124
      %p126 = scmp.ne.s32.totalorder %s117, %s118
      %p127 = scmp.eq.s32.totalorder %s23, 0
      %p128 = por %p126, %p127
      %p129 = scmp.ne.s32.totalorder %s117, %s118
      %p130 = scmp.eq.s32.totalorder %s24, 1
      %p131 = por %p129, %p130
      %p133 = scmp.ne.s32.totalorder %s118, %s132
      %p134 = scmp.eq.s32.totalorder %s24, 0
      %p135 = por %p133, %p134
      %s137 = sadd.s32 %s136, 1
      %p140 = scmp.eq.s32.totalorder %s18, 1
      %p141 = scmp.ne.s32.totalorder %s136, %s138
      %p142 = scmp.eq.s32.totalorder %s18, 0
      %p143 = por %p141, %p142
      %p144 = scmp.ne.s32.totalorder %s136, %s138
      %p145 = scmp.eq.s32.totalorder %s23, 1
      %p146 = por %p144, %p145
      %p147 = scmp.ne.s32.totalorder %s138, %s139
      %p148 = scmp.eq.s32.totalorder %s23, 0
      %p149 = por %p147, %p148
      %p150 = scmp.ne.s32.totalorder %s138, %s139
      %p151 = scmp.eq.s32.totalorder %s24, 1
      %p152 = por %p150, %p151
      %p154 = scmp.ne.s32.totalorder %s139, %s153
      %p155 = scmp.eq.s32.totalorder %s24, 0
      %p156 = por %p154, %p155
      %s158 = sadd.s32 %s157, 1
      %p161 = scmp.eq.s32.totalorder %s18, 1
      %p162 = scmp.ne.s32.totalorder %s157, %s159
      %p163 = scmp.eq.s32.totalorder %s18, 0
      %p164 = por %p162, %p163
      %p165 = scmp.ne.s32.totalorder %s157, %s159
      %p166 = scmp.eq.s32.totalorder %s23, 1
      %p167 = por %p165, %p166
      %p168 = scmp.ne.s32.totalorder %s159, %s160
      %p169 = scmp.eq.s32.totalorder %s23, 0
      %p170 = por %p168, %p169
      %p171 = scmp.ne.s32.totalorder %s159, %s160
      %p172 = scmp.eq.s32.totalorder %s24, 1
      %p173 = por %p171, %p172
      %p175 = scmp.ne.s32.totalorder %s160, %s174
      %p176 = scmp.eq.s32.totalorder %s24, 0
      %p177 = por %p175, %p176
      %s178 = ssub.s32 %s18, %s25
      %p179 = scmp.eq.s32.totalorder %s178, 0
      %s181 = sadd.s32 %s180, 1
      %s182 = scalar_select %p179, %s180, %s181
      %p185 = pneg %p179
      %p186 = scmp.eq.s32.totalorder %s18, 1
      %p187 = por %p185, %p186
      %p188 = scmp.ne.s32.totalorder %s180, %s183
      %p189 = scmp.eq.s32.totalorder %s18, 0
      %p190 = por %p188, %p189
      %p191 = scmp.ne.s32.totalorder %s180, %s183
      %p192 = scmp.eq.s32.totalorder %s23, 1
      %p193 = por %p191, %p192
      %p194 = scmp.ne.s32.totalorder %s183, %s184
      %p195 = scmp.eq.s32.totalorder %s23, 0
      %p196 = por %p194, %p195
      %p197 = scmp.ne.s32.totalorder %s183, %s184
      %p198 = scmp.eq.s32.totalorder %s24, 1
      %p199 = por %p197, %p198
      %p201 = scmp.ne.s32.totalorder %s184, %s200
      %p202 = scmp.eq.s32.totalorder %s24, 0
      %p203 = por %p201, %p202
      %p204 = scmp.le.s32.totalorder 1, %s18
      %p205 = scmp.lt.s32.totalorder %s18, 3
      %p206 = pnand %p204, %p205
      %p207 = pneg %p206
      // Predicated region
      $region9: #{tpu_custom_call.1} parent=5 // pred_check
        _
      $region10: #{tpu_custom_call.1} parent=5 // pred_check_branch
        %209 = sbr.rel (%p206) target = $region12
      $region11: #{tpu_custom_call.1} parent=5 // pred_region
        %s210 = ssub.s32 %s18, 1
        // Predicated region
        $region13: #{tpu_custom_call.1} parent=11 // pred_check
          %p211 = pneg %p65
        $region14: #{tpu_custom_call.1} parent=11 // pred_check_branch
          %213 = sbr.rel (%p211) target = $region16
        $region15: #{tpu_custom_call.1} parent=11 // pred_region
          _
        $region16: #{tpu_custom_call.1} parent=11 // pred_fallthru
          _
        // Predicated region
        $region17: #{tpu_custom_call.1} parent=11 // pred_check
          %p214 = pneg %p86
        $region18: #{tpu_custom_call.1} parent=11 // pred_check_branch
          %216 = sbr.rel (%p214) target = $region20
        $region19: #{tpu_custom_call.1} parent=11 // pred_region
          _
        $region20: #{tpu_custom_call.1} parent=11 // pred_fallthru
          _
        // Predicated region
        $region21: #{tpu_custom_call.1} parent=11 // pred_check
          %p217 = pneg %p107
        $region22: #{tpu_custom_call.1} parent=11 // pred_check_branch
          %219 = sbr.rel (%p217) target = $region24
        $region23: #{tpu_custom_call.1} parent=11 // pred_region
          _
        $region24: #{tpu_custom_call.1} parent=11 // pred_fallthru
          _
        // Predicated region
        $region25: #{tpu_custom_call.1} parent=11 // pred_check
          %p220 = pneg %p128
        $region26: #{tpu_custom_call.1} parent=11 // pred_check_branch
          %222 = sbr.rel (%p220) target = $region28
        $region27: #{tpu_custom_call.1} parent=11 // pred_region
          _
        $region28: #{tpu_custom_call.1} parent=11 // pred_fallthru
          _
        // Predicated region
        $region29: #{tpu_custom_call.1} parent=11 // pred_check
          %p223 = pneg %p149
        $region30: #{tpu_custom_call.1} parent=11 // pred_check_branch
          %225 = sbr.rel (%p223) target = $region32
        $region31: #{tpu_custom_call.1} parent=11 // pred_region
          _
        $region32: #{tpu_custom_call.1} parent=11 // pred_fallthru
          _
        // Predicated region
        $region33: #{tpu_custom_call.1} parent=11 // pred_check
          %p226 = pneg %p170
        $region34: #{tpu_custom_call.1} parent=11 // pred_check_branch
          %228 = sbr.rel (%p226) target = $region36
        $region35: #{tpu_custom_call.1} parent=11 // pred_region
          _
        $region36: #{tpu_custom_call.1} parent=11 // pred_fallthru
          _
      $region12: #{tpu_custom_call.1} parent=5 // pred_fallthru
        _
      %p229 = scmp.lt.s32.totalorder %s18, 2
      // Predicated region
      $region37: #{tpu_custom_call.1} parent=5 // pred_check
        %p230 = pneg %p229
      $region38: #{tpu_custom_call.1} parent=5 // pred_check_branch
        %232 = sbr.rel (%p230) target = $region40
      $region39: #{tpu_custom_call.1} parent=5 // pred_region
        // Predicated region
        $region41: #{tpu_custom_call.1} parent=39 // pred_check
          %p233 = pneg %p38
        $region42: #{tpu_custom_call.1} parent=39 // pred_check_branch
          %235 = sbr.rel (%p233) target = $region44
        $region43: #{tpu_custom_call.1} parent=39 // pred_region
          %s236 = smul.u32 32, %s18
          %s237 = ssub.s32 38, %s236
          %p238 = scmp.lt.s32.totalorder %s237, 32
          %s239 = scalar_select %p238, %s237, 32
          %s240 = smul.u32 64, %s239
          %p241 = scmp.lt.s32.totalorder %s236, 37
          %s242 = scalar_select %p241, %s236, 37
          %s243 = smul.addr %s242, 4
          %s244 = scalar_lea.vmem %s0, %s243
          %s245 = smul.u32 32, %s18
          %s246 = ssub.s32 38, %s245
          %p247 = scmp.lt.s32.totalorder %s246, 32
          %s248 = scalar_select %p247, %s246, 32
          %s249 = smul.u32 64, %s248
        $region44: #{tpu_custom_call.1} parent=39 // pred_fallthru
          _
      $region40: #{tpu_custom_call.1} parent=5 // pred_fallthru
        _
      %p250 = scmp.le.s32.totalorder 1, %s18
      %p251 = scmp.lt.s32.totalorder %s18, 3
      %p252 = pnand %p250, %p251
      %p253 = pneg %p252
      // Predicated region
      $region45: #{tpu_custom_call.1} parent=5 // pred_check
        _
      $region46: #{tpu_custom_call.1} parent=5 // pred_check_branch
        %255 = sbr.rel (%p252) target = $region48
      $region47: #{tpu_custom_call.1} parent=5 // pred_region
        %s256 = ssub.s32 %s18, 1
        %s257 = smul.u32 32, %s23
        %s258 = ssub.s32 38, %s257
        %p259 = scmp.lt.s32.totalorder %s258, 32
        %s260 = scalar_select %p259, %s258, 32
        %s261 = smul.u32 64, %s260
        %p262 = scmp.lt.s32.totalorder %s257, 37
        %s263 = scalar_select %p262, %s257, 37
        %s264 = smul.addr %s263, 4
        %s265 = scalar_lea.vmem %s0, %s264
        %p266 = pneg %p44
        %p267 = pneg %p41
        %p268 = pneg %p65
        %p269 = pneg %p62
        %p270 = pneg %p86
        %p271 = pneg %p83
        %p272 = pneg %p107
        %p273 = pneg %p104
        %p274 = pneg %p128
        %p275 = pneg %p125
        %p276 = pneg %p149
        %p277 = pneg %p146
        %p278 = pneg %p170
        %p279 = pneg %p167
        %p280 = pneg %p196
        %p281 = pneg %p193
        %s282 = sand.u32 %s183, 1
        %s283 = scalar_lea.sflag [#allocation4], %s282
        %s284 = sand.u32 %s183, 1
        %s285 = smul.addr %s284, 2
        %s286 = scalar_lea.vmem [#allocation3], %s285
        %s287 = smul.u32 32, %s23
        %s288 = ssub.s32 38, %s287
        %p289 = scmp.lt.s32.totalorder %s288, 32
        %s290 = scalar_select %p289, %s288, 32
        %s291 = smul.u32 64, %s290
        %p292 = scmp.lt.s32.totalorder %s287, 37
        %s293 = scalar_select %p292, %s287, 37
        %s294 = smul.addr %s293, 4
        %s295 = scalar_lea.vmem %s0, %s294
        %s296 = smul.u32 32, %s23
        %s297 = ssub.s32 38, %s296
        %p298 = scmp.lt.s32.totalorder %s297, 32
        %s299 = scalar_select %p298, %s297, 32
        %s300 = smul.u32 64, %s299
        %s301 = smul.u32 2, %s23
        %s302 = ssub.s32 3, %s301
        %p303 = scmp.lt.s32.totalorder %s302, 2
        %s304 = scalar_select %p303, %s302, 2
        %s305 = smul.u32 16, %s304
        %v307 = vld [vmem:[%s295] sm:$0xf]
        %v308 = vld [vmem:[%s295 + $0x4] sm:$0xf]
        %v309 = vld [vmem:[%s295 + $0x8] sm:$0xf]
        %v310 = vld [vmem:[%s295 + $0xc] sm:$0xf]
        %v311 = vld [vmem:[%s295 + $0x10] sm:$0xf]
        %v312 = vld [vmem:[%s295 + $0x14] sm:$0xf]
        %v313 = vld [vmem:[%s295 + $0x18] sm:$0xf]
        %v314 = vld [vmem:[%s295 + $0x1c] sm:$0xf]
        %v315 = vld [vmem:[%s295 + $0x20] sm:$0xf]
        %v316 = vld [vmem:[%s295 + $0x24] sm:$0xf]
        %v317 = vld [vmem:[%s295 + $0x28] sm:$0xf]
        %v318 = vld [vmem:[%s295 + $0x2c] sm:$0xf]
        %v319 = vld [vmem:[%s295 + $0x30] sm:$0xf]
        %v320 = vld [vmem:[%s295 + $0x34] sm:$0xf]
        %v321 = vld [vmem:[%s295 + $0x38] sm:$0xf]
        %v322 = vld [vmem:[%s295 + $0x3c] sm:$0xf]
        %v323 = vld [vmem:[%s295 + $0x40] sm:$0xf]
        %v324 = vld [vmem:[%s295 + $0x44] sm:$0xf]
        %v325 = vld [vmem:[%s295 + $0x48] sm:$0xf]
        %v326 = vld [vmem:[%s295 + $0x4c] sm:$0xf]
        %v327 = vld [vmem:[%s295 + $0x50] sm:$0xf]
        %v328 = vld [vmem:[%s295 + $0x54] sm:$0xf]
        %v329 = vld [vmem:[%s295 + $0x58] sm:$0xf]
        %v330 = vld [vmem:[%s295 + $0x5c] sm:$0xf]
        %v331 = vld [vmem:[%s295 + $0x60] sm:$0xf]
        %v332 = vld [vmem:[%s295 + $0x64] sm:$0xf]
        %v333 = vld [vmem:[%s295 + $0x68] sm:$0xf]
        %v334 = vld [vmem:[%s295 + $0x6c] sm:$0xf]
        %v335 = vld [vmem:[%s295 + $0x70] sm:$0xf]
        %v336 = vld [vmem:[%s295 + $0x74] sm:$0xf]
        %v337 = vld [vmem:[%s295 + $0x78] sm:$0xf]
        %v338 = vld [vmem:[%s295 + $0x7c] sm:$0xf]
        %v339 = vld [vmem:[%s1] sm:$0xf]
        %v340 = vld [vmem:[%s1 + $0x4] sm:$0xf]
        %v341 = vld [vmem:[%s1 + $0x8] sm:$0xf]
        %v342 = vld [vmem:[%s1 + $0xc] sm:$0xf]
        %v343 = vld [vmem:[%s1 + $0x10] sm:$0xf]
        %v344 = vld [vmem:[%s1 + $0x14] sm:$0xf]
        %v345 = vld [vmem:[%s2] sm:$0x1]
        %v347 = vlaneseq
        %v348 = vshrl.u32 %v347, 7
        %v349 = vsub.s32 0, %v348
        %v350 = vrot.slane %v345, %v349
        %v384 = vunpack.c.l.b16 %v307
        %v385 = vunpack.c.l.b16 %v308
        %v386 = vunpack.c.l.b16 %v309
        %v387 = vunpack.c.l.b16 %v310
        %v388 = vunpack.c.l.b16 %v311
        %v389 = vunpack.c.l.b16 %v312
        %v390 = vunpack.c.l.b16 %v313
        %v391 = vunpack.c.l.b16 %v314
        %v392 = vunpack.c.l.b16 %v315
        %v393 = vunpack.c.l.b16 %v316
        %v394 = vunpack.c.l.b16 %v317
        %v395 = vunpack.c.l.b16 %v318
        %v396 = vunpack.c.l.b16 %v319
        %v397 = vunpack.c.l.b16 %v320
        %v398 = vunpack.c.l.b16 %v321
        %v399 = vunpack.c.l.b16 %v322
        %v400 = vunpack.c.l.b16 %v323
        %v401 = vunpack.c.l.b16 %v324
        %v402 = vunpack.c.l.b16 %v325
        %v403 = vunpack.c.l.b16 %v326
        %v404 = vunpack.c.l.b16 %v327
        %v405 = vunpack.c.l.b16 %v328
        %v406 = vunpack.c.l.b16 %v329
        %v407 = vunpack.c.l.b16 %v330
        %v408 = vunpack.c.l.b16 %v331
        %v409 = vunpack.c.l.b16 %v332
        %v410 = vunpack.c.l.b16 %v333
        %v411 = vunpack.c.l.b16 %v334
        %v412 = vunpack.c.l.b16 %v335
        %v413 = vunpack.c.l.b16 %v336
        %v414 = vunpack.c.l.b16 %v337
        %v415 = vunpack.c.l.b16 %v338
        %v416 = vpack.c.b16 %v385, %v384
        %v417 = vpack.c.b16 %v387, %v386
        %v418 = vpack.c.b16 %v389, %v388
        %v419 = vpack.c.b16 %v391, %v390
        %v420 = vpack.c.b16 %v393, %v392
        %v421 = vpack.c.b16 %v395, %v394
        %v422 = vpack.c.b16 %v397, %v396
        %v423 = vpack.c.b16 %v399, %v398
        %v424 = vpack.c.b16 %v401, %v400
        %v425 = vpack.c.b16 %v403, %v402
        %v426 = vpack.c.b16 %v405, %v404
        %v427 = vpack.c.b16 %v407, %v406
        %v428 = vpack.c.b16 %v409, %v408
        %v429 = vpack.c.b16 %v411, %v410
        %v430 = vpack.c.b16 %v413, %v412
        %v431 = vpack.c.b16 %v415, %v414
        %v438 = vunpack.c.l.b16 %v339
        %v439 = vunpack.c.l.b16 %v340
        %v440 = vunpack.c.l.b16 %v341
        %v441 = vunpack.c.l.b16 %v342
        %v442 = vunpack.c.l.b16 %v343
        %v443 = vunpack.c.l.b16 %v344
        %v444 = vpack.c.b16 %v439, %v438
        %v445 = vpack.c.b16 %v441, %v440
        %v446 = vpack.c.b16 %v443, %v442
        %vm450 = vcmask 392192
        %v452 = vsel %vm450, %v416, 0
        %v455 = vsel %vm450, %v417, 0
        %v458 = vsel %vm450, %v418, 0
        %v461 = vsel %vm450, %v419, 0
        %v464 = vsel %vm450, %v420, 0
        %v467 = vsel %vm450, %v421, 0
        %v470 = vsel %vm450, %v422, 0
        %v473 = vsel %vm450, %v423, 0
        %v476 = vsel %vm450, %v424, 0
        %v479 = vsel %vm450, %v425, 0
        %v482 = vsel %vm450, %v426, 0
        %v485 = vsel %vm450, %v427, 0
        %v488 = vsel %vm450, %v428, 0
        %v491 = vsel %vm450, %v429, 0
        %v494 = vsel %vm450, %v430, 0
        %v497 = vsel %vm450, %v431, 0
        %499 = vmatprep.subr.bf16.mxu0 0
        %500 = vmatpush1.bf16.msra.mxu0 0
        %501 = vmatprep.subr.bf16.mxu0 0
        %502 = vmatpush1.bf16.msra.mxu0 0
        %503 = vmatprep.subr.bf16.mxu0 0
        %504 = vmatpush1.bf16.msra.mxu0 0
        %505 = vmatprep.subr.bf16.mxu0 0
        %506 = vmatpush1.bf16.msra.mxu0 0
        %507 = vmatprep.subr.bf16.mxu0 0
        %508 = vmatpush1.bf16.msra.mxu0 0
        %509 = vmatprep.subr.bf16.mxu0 0
        %510 = vmatpush1.bf16.msra.mxu0 %v446
        %511 = vmatprep.subr.bf16.mxu0 0
        %512 = vmatpush1.bf16.msra.mxu0 %v445
        %513 = vmatprep.subr.bf16.mxu0 0
        %514 = vmatpush1.bf16.msra.mxu0 %v444
        %515 = vmatprep.subr.bf16.mxu0 0
        %516 = vmatpush2.bf16.msra.mxu0 0
        %517 = vmatprep.subr.bf16.mxu0 0
        %518 = vmatpush2.bf16.msra.mxu0 0
        %519 = vmatprep.subr.bf16.mxu0 0
        %520 = vmatpush2.bf16.msra.mxu0 0
        %521 = vmatprep.subr.bf16.mxu0 0
        %522 = vmatpush2.bf16.msra.mxu0 0
        %523 = vmatprep.subr.bf16.mxu0 0
        %524 = vmatpush2.bf16.msra.mxu0 0
        %525 = vmatprep.subr.bf16.mxu0 0
        %526 = vmatpush2.bf16.msra.mxu0 0
        %527 = vmatprep.subr.bf16.mxu0 0
        %528 = vmatpush2.bf16.msra.mxu0 0
        %529 = vmatprep.subr.bf16.mxu0 0
        %530 = vmatpush2.bf16.msra.mxu0 0
        %531 = vmatprep.mubr.bf16.mxu0 0
        %532 = vmatmul.mubr.bf16.gmra.mxu0 %v452
        %v533 = vpop.f32.mrf.mxu0
        %v534 = vadd.f32 %v350, %v533
        %v535 = vpop.f32.mrf.mxu0
        %v536 = vpop.f32.mrf.mxu0
        %v537 = vadd.f32 %v350, %v536
        %v538 = vpop.f32.mrf.mxu0
        %539 = vmatprep.mubr.bf16.mxu0 0
        %540 = vmatmul.mubr.bf16.gmra.mxu0 %v455
        %v541 = vpop.f32.mrf.mxu0
        %v542 = vadd.f32 %v350, %v541
        %v543 = vpop.f32.mrf.mxu0
        %v544 = vpop.f32.mrf.mxu0
        %v545 = vadd.f32 %v350, %v544
        %v546 = vpop.f32.mrf.mxu0
        %547 = vmatprep.mubr.bf16.mxu0 0
        %548 = vmatmul.mubr.bf16.gmra.mxu0 %v458
        %v549 = vpop.f32.mrf.mxu0
        %v550 = vadd.f32 %v350, %v549
        %v551 = vpop.f32.mrf.mxu0
        %v552 = vpop.f32.mrf.mxu0
        %v553 = vadd.f32 %v350, %v552
        %v554 = vpop.f32.mrf.mxu0
        %555 = vmatprep.mubr.bf16.mxu0 0
        %556 = vmatmul.mubr.bf16.gmra.mxu0 %v461
        %v557 = vpop.f32.mrf.mxu0
        %v558 = vadd.f32 %v350, %v557
        %v559 = vpop.f32.mrf.mxu0
        %v560 = vpop.f32.mrf.mxu0
        %v561 = vadd.f32 %v350, %v560
        %v562 = vpop.f32.mrf.mxu0
        %563 = vmatprep.mubr.bf16.mxu0 0
        %564 = vmatmul.mubr.bf16.gmra.mxu0 %v464
        %v565 = vpop.f32.mrf.mxu0
        %v566 = vadd.f32 %v350, %v565
        %v567 = vpop.f32.mrf.mxu0
        %v568 = vpop.f32.mrf.mxu0
        %v569 = vadd.f32 %v350, %v568
        %v570 = vpop.f32.mrf.mxu0
        %571 = vmatprep.mubr.bf16.mxu0 0
        %572 = vmatmul.mubr.bf16.gmra.mxu0 %v467
        %v573 = vpop.f32.mrf.mxu0
        %v574 = vadd.f32 %v350, %v573
        %v575 = vpop.f32.mrf.mxu0
        %v576 = vpop.f32.mrf.mxu0
        %v577 = vadd.f32 %v350, %v576
        %v578 = vpop.f32.mrf.mxu0
        %579 = vmatprep.mubr.bf16.mxu0 0
        %580 = vmatmul.mubr.bf16.gmra.mxu0 %v470
        %v581 = vpop.f32.mrf.mxu0
        %v582 = vadd.f32 %v350, %v581
        %v583 = vpop.f32.mrf.mxu0
        %v584 = vpop.f32.mrf.mxu0
        %v585 = vadd.f32 %v350, %v584
        %v586 = vpop.f32.mrf.mxu0
        %587 = vmatprep.mubr.bf16.mxu0 0
        %588 = vmatmul.mubr.bf16.gmra.mxu0 %v473
        %v589 = vpop.f32.mrf.mxu0
        %v590 = vadd.f32 %v350, %v589
        %v591 = vpop.f32.mrf.mxu0
        %v592 = vpop.f32.mrf.mxu0
        %v593 = vadd.f32 %v350, %v592
        %v594 = vpop.f32.mrf.mxu0
        %595 = vmatprep.mubr.bf16.mxu0 0
        %596 = vmatmul.mubr.bf16.gmra.mxu0 %v476
        %v597 = vpop.f32.mrf.mxu0
        %v598 = vadd.f32 %v350, %v597
        %v599 = vpop.f32.mrf.mxu0
        %v600 = vpop.f32.mrf.mxu0
        %v601 = vadd.f32 %v350, %v600
        %v602 = vpop.f32.mrf.mxu0
        %603 = vmatprep.mubr.bf16.mxu0 0
        %604 = vmatmul.mubr.bf16.gmra.mxu0 %v479
        %v605 = vpop.f32.mrf.mxu0
        %v606 = vadd.f32 %v350, %v605
        %v607 = vpop.f32.mrf.mxu0
        %v608 = vpop.f32.mrf.mxu0
        %v609 = vadd.f32 %v350, %v608
        %v610 = vpop.f32.mrf.mxu0
        %611 = vmatprep.mubr.bf16.mxu0 0
        %612 = vmatmul.mubr.bf16.gmra.mxu0 %v482
        %v613 = vpop.f32.mrf.mxu0
        %v614 = vadd.f32 %v350, %v613
        %v615 = vpop.f32.mrf.mxu0
        %v616 = vpop.f32.mrf.mxu0
        %v617 = vadd.f32 %v350, %v616
        %v618 = vpop.f32.mrf.mxu0
        %619 = vmatprep.mubr.bf16.mxu0 0
        %620 = vmatmul.mubr.bf16.gmra.mxu0 %v485
        %v621 = vpop.f32.mrf.mxu0
        %v622 = vadd.f32 %v350, %v621
        %v623 = vpop.f32.mrf.mxu0
        %v624 = vpop.f32.mrf.mxu0
        %v625 = vadd.f32 %v350, %v624
        %v626 = vpop.f32.mrf.mxu0
        %627 = vmatprep.mubr.bf16.mxu0 0
        %628 = vmatmul.mubr.bf16.gmra.mxu0 %v488
        %v629 = vpop.f32.mrf.mxu0
        %v630 = vadd.f32 %v350, %v629
        %v631 = vpop.f32.mrf.mxu0
        %v632 = vpop.f32.mrf.mxu0
        %v633 = vadd.f32 %v350, %v632
        %v634 = vpop.f32.mrf.mxu0
        %635 = vmatprep.mubr.bf16.mxu0 0
        %636 = vmatmul.mubr.bf16.gmra.mxu0 %v491
        %v637 = vpop.f32.mrf.mxu0
        %v638 = vadd.f32 %v350, %v637
        %v639 = vpop.f32.mrf.mxu0
        %v640 = vpop.f32.mrf.mxu0
        %v641 = vadd.f32 %v350, %v640
        %v642 = vpop.f32.mrf.mxu0
        %643 = vmatprep.mubr.bf16.mxu0 0
        %644 = vmatmul.mubr.bf16.gmra.mxu0 %v494
        %v645 = vpop.f32.mrf.mxu0
        %v646 = vadd.f32 %v350, %v645
        %v647 = vpop.f32.mrf.mxu0
        %v648 = vpop.f32.mrf.mxu0
        %v649 = vadd.f32 %v350, %v648
        %v650 = vpop.f32.mrf.mxu0
        %651 = vmatprep.mubr.bf16.mxu0 0
        %652 = vmatmul.mubr.bf16.gmra.mxu0 %v497
        %v653 = vpop.f32.mrf.mxu0
        %v654 = vadd.f32 %v350, %v653
        %v655 = vpop.f32.mrf.mxu0
        %v656 = vpop.f32.mrf.mxu0
        %v657 = vadd.f32 %v350, %v656
        %v658 = vpop.f32.mrf.mxu0
        %659 = vdwg.mxu0
        %v660 = vmax.f32 %v534, 0.0
        %v661 = vmax.f32 %v537, 0.0
        %v662 = vmax.f32 %v542, 0.0
        %v663 = vmax.f32 %v545, 0.0
        %v664 = vmax.f32 %v550, 0.0
        %v665 = vmax.f32 %v553, 0.0
        %v666 = vmax.f32 %v558, 0.0
        %v667 = vmax.f32 %v561, 0.0
        %v668 = vmax.f32 %v566, 0.0
        %v669 = vmax.f32 %v569, 0.0
        %v670 = vmax.f32 %v574, 0.0
        %v671 = vmax.f32 %v577, 0.0
        %v672 = vmax.f32 %v582, 0.0
        %v673 = vmax.f32 %v585, 0.0
        %v674 = vmax.f32 %v590, 0.0
        %v675 = vmax.f32 %v593, 0.0
        %v676 = vmax.f32 %v598, 0.0
        %v677 = vmax.f32 %v601, 0.0
        %v678 = vmax.f32 %v606, 0.0
        %v679 = vmax.f32 %v609, 0.0
        %v680 = vmax.f32 %v614, 0.0
        %v681 = vmax.f32 %v617, 0.0
        %v682 = vmax.f32 %v622, 0.0
        %v683 = vmax.f32 %v625, 0.0
        %v684 = vmax.f32 %v630, 0.0
        %v685 = vmax.f32 %v633, 0.0
        %v686 = vmax.f32 %v638, 0.0
        %v687 = vmax.f32 %v641, 0.0
        %v688 = vmax.f32 %v646, 0.0
        %v689 = vmax.f32 %v649, 0.0
        %v690 = vmax.f32 %v654, 0.0
        %v691 = vmax.f32 %v657, 0.0
        %v692 = vpack.c.bf16 %v661, %v660
        %v693 = vpack.c.bf16 %v663, %v662
        %v694 = vpack.c.bf16 %v665, %v664
        %v695 = vpack.c.bf16 %v667, %v666
        %v696 = vpack.c.bf16 %v669, %v668
        %v697 = vpack.c.bf16 %v671, %v670
        %v698 = vpack.c.bf16 %v673, %v672
        %v699 = vpack.c.bf16 %v675, %v674
        %v700 = vpack.c.bf16 %v677, %v676
        %v701 = vpack.c.bf16 %v679, %v678
        %v702 = vpack.c.bf16 %v681, %v680
        %v703 = vpack.c.bf16 %v683, %v682
        %v704 = vpack.c.bf16 %v685, %v684
        %v705 = vpack.c.bf16 %v687, %v686
        %v706 = vpack.c.bf16 %v689, %v688
        %v707 = vpack.c.bf16 %v691, %v690
        %v708 = vld [vmem:[%s3] sm:$0xf]
        %v709 = vld [vmem:[%s3 + $0x4] sm:$0xf]
        %v710 = vld [vmem:[%s3 + $0x8] sm:$0xf]
        %v711 = vld [vmem:[%s3 + $0xc] sm:$0xf]
        %v712 = vld [vmem:[%s3 + $0x10] sm:$0xf]
        %v713 = vld [vmem:[%s3 + $0x14] sm:$0xf]
        %v714 = vld [vmem:[%s3 + $0x18] sm:$0xf]
        %v715 = vld [vmem:[%s3 + $0x1c] sm:$0xf]
        %v716 = vld [vmem:[%s4] sm:$0x1]
        %v718 = vlaneseq
        %v719 = vshrl.u32 %v718, 7
        %v720 = vsub.s32 0, %v719
        %v721 = vrot.slane %v716, %v720
        %v731 = vunpack.c.l.b16 %v708
        %v732 = vunpack.c.l.b16 %v709
        %v733 = vunpack.c.l.b16 %v710
        %v734 = vunpack.c.l.b16 %v711
        %v735 = vunpack.c.l.b16 %v712
        %v736 = vunpack.c.l.b16 %v713
        %v737 = vunpack.c.l.b16 %v714
        %v738 = vunpack.c.l.b16 %v715
        %v739 = vpack.c.b16 %v732, %v731
        %v740 = vpack.c.b16 %v734, %v733
        %v741 = vpack.c.b16 %v736, %v735
        %v742 = vpack.c.b16 %v738, %v737
        %vm747 = vcmask 523264
        %v749 = vsel %vm747, %v692, 0
        %v752 = vsel %vm747, %v693, 0
        %v755 = vsel %vm747, %v694, 0
        %v758 = vsel %vm747, %v695, 0
        %v761 = vsel %vm747, %v696, 0
        %v764 = vsel %vm747, %v697, 0
        %v767 = vsel %vm747, %v698, 0
        %v770 = vsel %vm747, %v699, 0
        %v773 = vsel %vm747, %v700, 0
        %v776 = vsel %vm747, %v701, 0
        %v779 = vsel %vm747, %v702, 0
        %v782 = vsel %vm747, %v703, 0
        %v785 = vsel %vm747, %v704, 0
        %v788 = vsel %vm747, %v705, 0
        %v791 = vsel %vm747, %v706, 0
        %v794 = vsel %vm747, %v707, 0
        %796 = vmatprep.subr.bf16.mxu0 0
        %797 = vmatpush1.bf16.msra.mxu0 0
        %798 = vmatprep.subr.bf16.mxu0 0
        %799 = vmatpush1.bf16.msra.mxu0 0
        %800 = vmatprep.subr.bf16.mxu0 0
        %801 = vmatpush1.bf16.msra.mxu0 0
        %802 = vmatprep.subr.bf16.mxu0 0
        %803 = vmatpush1.bf16.msra.mxu0 0
        %804 = vmatprep.subr.bf16.mxu0 0
        %805 = vmatpush1.bf16.msra.mxu0 %v742
        %806 = vmatprep.subr.bf16.mxu0 0
        %807 = vmatpush1.bf16.msra.mxu0 %v741
        %808 = vmatprep.subr.bf16.mxu0 0
        %809 = vmatpush1.bf16.msra.mxu0 %v740
        %810 = vmatprep.subr.bf16.mxu0 0
        %811 = vmatpush1.bf16.msra.mxu0 %v739
        %812 = vmatprep.subr.bf16.mxu0 0
        %813 = vmatpush2.bf16.msra.mxu0 0
        %814 = vmatprep.subr.bf16.mxu0 0
        %815 = vmatpush2.bf16.msra.mxu0 0
        %816 = vmatprep.subr.bf16.mxu0 0
        %817 = vmatpush2.bf16.msra.mxu0 0
        %818 = vmatprep.subr.bf16.mxu0 0
        %819 = vmatpush2.bf16.msra.mxu0 0
        %820 = vmatprep.subr.bf16.mxu0 0
        %821 = vmatpush2.bf16.msra.mxu0 0
        %822 = vmatprep.subr.bf16.mxu0 0
        %823 = vmatpush2.bf16.msra.mxu0 0
        %824 = vmatprep.subr.bf16.mxu0 0
        %825 = vmatpush2.bf16.msra.mxu0 0
        %826 = vmatprep.subr.bf16.mxu0 0
        %827 = vmatpush2.bf16.msra.mxu0 0
        %828 = vmatprep.mubr.bf16.mxu0 0
        %829 = vmatmul.mubr.bf16.gmra.mxu0 %v749
        %v830 = vpop.f32.mrf.mxu0
        %v831 = vadd.f32 %v721, %v830
        %v832 = vpop.f32.mrf.mxu0
        %v833 = vpop.f32.mrf.mxu0
        %v834 = vadd.f32 %v721, %v833
        %v835 = vpop.f32.mrf.mxu0
        %836 = vmatprep.mubr.bf16.mxu0 0
        %837 = vmatmul.mubr.bf16.gmra.mxu0 %v752
        %v838 = vpop.f32.mrf.mxu0
        %v839 = vadd.f32 %v721, %v838
        %v840 = vpop.f32.mrf.mxu0
        %v841 = vpop.f32.mrf.mxu0
        %v842 = vadd.f32 %v721, %v841
        %v843 = vpop.f32.mrf.mxu0
        %844 = vmatprep.mubr.bf16.mxu0 0
        %845 = vmatmul.mubr.bf16.gmra.mxu0 %v755
        %v846 = vpop.f32.mrf.mxu0
        %v847 = vadd.f32 %v721, %v846
        %v848 = vpop.f32.mrf.mxu0
        %v849 = vpop.f32.mrf.mxu0
        %v850 = vadd.f32 %v721, %v849
        %v851 = vpop.f32.mrf.mxu0
        %852 = vmatprep.mubr.bf16.mxu0 0
        %853 = vmatmul.mubr.bf16.gmra.mxu0 %v758
        %v854 = vpop.f32.mrf.mxu0
        %v855 = vadd.f32 %v721, %v854
        %v856 = vpop.f32.mrf.mxu0
        %v857 = vpop.f32.mrf.mxu0
        %v858 = vadd.f32 %v721, %v857
        %v859 = vpop.f32.mrf.mxu0
        %860 = vmatprep.mubr.bf16.mxu0 0
        %861 = vmatmul.mubr.bf16.gmra.mxu0 %v761
        %v862 = vpop.f32.mrf.mxu0
        %v863 = vadd.f32 %v721, %v862
        %v864 = vpop.f32.mrf.mxu0
        %v865 = vpop.f32.mrf.mxu0
        %v866 = vadd.f32 %v721, %v865
        %v867 = vpop.f32.mrf.mxu0
        %868 = vmatprep.mubr.bf16.mxu0 0
        %869 = vmatmul.mubr.bf16.gmra.mxu0 %v764
        %v870 = vpop.f32.mrf.mxu0
        %v871 = vadd.f32 %v721, %v870
        %v872 = vpop.f32.mrf.mxu0
        %v873 = vpop.f32.mrf.mxu0
        %v874 = vadd.f32 %v721, %v873
        %v875 = vpop.f32.mrf.mxu0
        %876 = vmatprep.mubr.bf16.mxu0 0
        %877 = vmatmul.mubr.bf16.gmra.mxu0 %v767
        %v878 = vpop.f32.mrf.mxu0
        %v879 = vadd.f32 %v721, %v878
        %v880 = vpop.f32.mrf.mxu0
        %v881 = vpop.f32.mrf.mxu0
        %v882 = vadd.f32 %v721, %v881
        %v883 = vpop.f32.mrf.mxu0
        %884 = vmatprep.mubr.bf16.mxu0 0
        %885 = vmatmul.mubr.bf16.gmra.mxu0 %v770
        %v886 = vpop.f32.mrf.mxu0
        %v887 = vadd.f32 %v721, %v886
        %v888 = vpop.f32.mrf.mxu0
        %v889 = vpop.f32.mrf.mxu0
        %v890 = vadd.f32 %v721, %v889
        %v891 = vpop.f32.mrf.mxu0
        %892 = vmatprep.mubr.bf16.mxu0 0
        %893 = vmatmul.mubr.bf16.gmra.mxu0 %v773
        %v894 = vpop.f32.mrf.mxu0
        %v895 = vadd.f32 %v721, %v894
        %v896 = vpop.f32.mrf.mxu0
        %v897 = vpop.f32.mrf.mxu0
        %v898 = vadd.f32 %v721, %v897
        %v899 = vpop.f32.mrf.mxu0
        %900 = vmatprep.mubr.bf16.mxu0 0
        %901 = vmatmul.mubr.bf16.gmra.mxu0 %v776
        %v902 = vpop.f32.mrf.mxu0
        %v903 = vadd.f32 %v721, %v902
        %v904 = vpop.f32.mrf.mxu0
        %v905 = vpop.f32.mrf.mxu0
        %v906 = vadd.f32 %v721, %v905
        %v907 = vpop.f32.mrf.mxu0
        %908 = vmatprep.mubr.bf16.mxu0 0
        %909 = vmatmul.mubr.bf16.gmra.mxu0 %v779
        %v910 = vpop.f32.mrf.mxu0
        %v911 = vadd.f32 %v721, %v910
        %v912 = vpop.f32.mrf.mxu0
        %v913 = vpop.f32.mrf.mxu0
        %v914 = vadd.f32 %v721, %v913
        %v915 = vpop.f32.mrf.mxu0
        %916 = vmatprep.mubr.bf16.mxu0 0
        %917 = vmatmul.mubr.bf16.gmra.mxu0 %v782
        %v918 = vpop.f32.mrf.mxu0
        %v919 = vadd.f32 %v721, %v918
        %v920 = vpop.f32.mrf.mxu0
        %v921 = vpop.f32.mrf.mxu0
        %v922 = vadd.f32 %v721, %v921
        %v923 = vpop.f32.mrf.mxu0
        %924 = vmatprep.mubr.bf16.mxu0 0
        %925 = vmatmul.mubr.bf16.gmra.mxu0 %v785
        %v926 = vpop.f32.mrf.mxu0
        %v927 = vadd.f32 %v721, %v926
        %v928 = vpop.f32.mrf.mxu0
        %v929 = vpop.f32.mrf.mxu0
        %v930 = vadd.f32 %v721, %v929
        %v931 = vpop.f32.mrf.mxu0
        %932 = vmatprep.mubr.bf16.mxu0 0
        %933 = vmatmul.mubr.bf16.gmra.mxu0 %v788
        %v934 = vpop.f32.mrf.mxu0
        %v935 = vadd.f32 %v721, %v934
        %v936 = vpop.f32.mrf.mxu0
        %v937 = vpop.f32.mrf.mxu0
        %v938 = vadd.f32 %v721, %v937
        %v939 = vpop.f32.mrf.mxu0
        %940 = vmatprep.mubr.bf16.mxu0 0
        %941 = vmatmul.mubr.bf16.gmra.mxu0 %v791
        %v942 = vpop.f32.mrf.mxu0
        %v943 = vadd.f32 %v721, %v942
        %v944 = vpop.f32.mrf.mxu0
        %v945 = vpop.f32.mrf.mxu0
        %v946 = vadd.f32 %v721, %v945
        %v947 = vpop.f32.mrf.mxu0
        %948 = vmatprep.mubr.bf16.mxu0 0
        %949 = vmatmul.mubr.bf16.gmra.mxu0 %v794
        %v950 = vpop.f32.mrf.mxu0
        %v951 = vadd.f32 %v721, %v950
        %v952 = vpop.f32.mrf.mxu0
        %v953 = vpop.f32.mrf.mxu0
        %v954 = vadd.f32 %v721, %v953
        %v955 = vpop.f32.mrf.mxu0
        %956 = vdwg.mxu0
        %v957 = vmax.f32 %v831, 0.0
        %v958 = vmax.f32 %v834, 0.0
        %v959 = vmax.f32 %v839, 0.0
        %v960 = vmax.f32 %v842, 0.0
        %v961 = vmax.f32 %v847, 0.0
        %v962 = vmax.f32 %v850, 0.0
        %v963 = vmax.f32 %v855, 0.0
        %v964 = vmax.f32 %v858, 0.0
        %v965 = vmax.f32 %v863, 0.0
        %v966 = vmax.f32 %v866, 0.0
        %v967 = vmax.f32 %v871, 0.0
        %v968 = vmax.f32 %v874, 0.0
        %v969 = vmax.f32 %v879, 0.0
        %v970 = vmax.f32 %v882, 0.0
        %v971 = vmax.f32 %v887, 0.0
        %v972 = vmax.f32 %v890, 0.0
        %v973 = vmax.f32 %v895, 0.0
        %v974 = vmax.f32 %v898, 0.0
        %v975 = vmax.f32 %v903, 0.0
        %v976 = vmax.f32 %v906, 0.0
        %v977 = vmax.f32 %v911, 0.0
        %v978 = vmax.f32 %v914, 0.0
        %v979 = vmax.f32 %v919, 0.0
        %v980 = vmax.f32 %v922, 0.0
        %v981 = vmax.f32 %v927, 0.0
        %v982 = vmax.f32 %v930, 0.0
        %v983 = vmax.f32 %v935, 0.0
        %v984 = vmax.f32 %v938, 0.0
        %v985 = vmax.f32 %v943, 0.0
        %v986 = vmax.f32 %v946, 0.0
        %v987 = vmax.f32 %v951, 0.0
        %v988 = vmax.f32 %v954, 0.0
        %v989 = vld [vmem:[%s5] sm:$0x1]
        %v990 = vpack.c.bf16 %v958, %v957
        %v991 = vpack.c.bf16 %v960, %v959
        %v992 = vpack.c.bf16 %v962, %v961
        %v993 = vpack.c.bf16 %v964, %v963
        %v994 = vpack.c.bf16 %v966, %v965
        %v995 = vpack.c.bf16 %v968, %v967
        %v996 = vpack.c.bf16 %v970, %v969
        %v997 = vpack.c.bf16 %v972, %v971
        %v998 = vpack.c.bf16 %v974, %v973
        %v999 = vpack.c.bf16 %v976, %v975
        %v1000 = vpack.c.bf16 %v978, %v977
        %v1001 = vpack.c.bf16 %v980, %v979
        %v1002 = vpack.c.bf16 %v982, %v981
        %v1003 = vpack.c.bf16 %v984, %v983
        %v1004 = vpack.c.bf16 %v986, %v985
        %v1005 = vpack.c.bf16 %v988, %v987
        %v1006 = vld [vmem:[#allocation2] sm:$0x1]
        %1008 = vset.pattern.permute.xlu0 0
        %1009 = vperm.xlu0 %1008, %v1006
        %v1010 = vpop.permute.xlu0 %1009
        %v1012 = vlaneseq
        %v1013 = vshrl.u32 %v1012, 7
        %v1014 = vsub.s32 0, %v1013
        %v1015 = vrot.slane %v1010, %v1014
        %v1017 = vsel %vm747, %v989, 0
        %v1020 = vsel %vm747, %v990, 0
        %v1023 = vsel %vm747, %v991, 0
        %v1026 = vsel %vm747, %v992, 0
        %v1029 = vsel %vm747, %v993, 0
        %v1032 = vsel %vm747, %v994, 0
        %v1035 = vsel %vm747, %v995, 0
        %v1038 = vsel %vm747, %v996, 0
        %v1041 = vsel %vm747, %v997, 0
        %v1044 = vsel %vm747, %v998, 0
        %v1047 = vsel %vm747, %v999, 0
        %v1050 = vsel %vm747, %v1000, 0
        %v1053 = vsel %vm747, %v1001, 0
        %v1056 = vsel %vm747, %v1002, 0
        %v1059 = vsel %vm747, %v1003, 0
        %v1062 = vsel %vm747, %v1004, 0
        %v1065 = vsel %vm747, %v1005, 0
        %1067 = vmatprep.subr.bf16.mxu0 0
        %1068 = vmatpush1.bf16.xpose.msra.mxu0 %v1041
        %1069 = vmatprep.subr.bf16.mxu0 0
        %1070 = vmatpush1.bf16.xpose.msra.mxu0 %v1038
        %1071 = vmatprep.subr.bf16.mxu0 0
        %1072 = vmatpush1.bf16.xpose.msra.mxu0 %v1035
        %1073 = vmatprep.subr.bf16.mxu0 0
        %1074 = vmatpush1.bf16.xpose.msra.mxu0 %v1032
        %1075 = vmatprep.subr.bf16.mxu0 0
        %1076 = vmatpush1.bf16.xpose.msra.mxu0 %v1029
        %1077 = vmatprep.subr.bf16.mxu0 0
        %1078 = vmatpush1.bf16.xpose.msra.mxu0 %v1026
        %1079 = vmatprep.subr.bf16.mxu0 0
        %1080 = vmatpush1.bf16.xpose.msra.mxu0 %v1023
        %1081 = vmatprep.subr.bf16.mxu0 0
        %1082 = vmatpush1.bf16.xpose.msra.mxu0 %v1020
        %1083 = vmatprep.subr.bf16.mxu0 0
        %1084 = vmatpush2.bf16.xpose.msra.mxu0 %v1065
        %1085 = vmatprep.subr.bf16.mxu0 0
        %1086 = vmatpush2.bf16.xpose.msra.mxu0 %v1062
        %1087 = vmatprep.subr.bf16.mxu0 0
        %1088 = vmatpush2.bf16.xpose.msra.mxu0 %v1059
        %1089 = vmatprep.subr.bf16.mxu0 0
        %1090 = vmatpush2.bf16.xpose.msra.mxu0 %v1056
        %1091 = vmatprep.subr.bf16.mxu0 0
        %1092 = vmatpush2.bf16.xpose.msra.mxu0 %v1053
        %1093 = vmatprep.subr.bf16.mxu0 0
        %1094 = vmatpush2.bf16.xpose.msra.mxu0 %v1050
        %1095 = vmatprep.subr.bf16.mxu0 0
        %1096 = vmatpush2.bf16.xpose.msra.mxu0 %v1047
        %1097 = vmatprep.subr.bf16.mxu0 0
        %1098 = vmatpush2.bf16.xpose.msra.mxu0 %v1044
        %1099 = vmatprep.mubr.bf16.mxu0 0
        %1100 = vmatmul.mubr.bf16.gmra.mxu0 %v1017
        %v1101 = vpop.f32.mrf.mxu0
        %v1102 = vadd.f32 %v1015, %v1101
        %v1103 = vpop.f32.mrf.mxu0
        %v1104 = vadd.f32 %v1015, %v1103
        %v1105 = vpop.f32.mrf.mxu0
        %v1106 = vpop.f32.mrf.mxu0
        %1107 = vdwg.mxu0
        %v1108 = vxor.u32 %v1102, 2147483648
        %v1109 = vxor.u32 %v1104, 2147483648
        %v1110 = vmul.f32 %v1108, 1.442695
        %v1111 = vpow.pop %v1110
        %v1112 = vmul.f32 %v1109, 1.442695
        %v1113 = vpow.pop %v1112
        %v1114 = vadd.f32 %v1111, 1.0
        %v1115 = vadd.f32 %v1113, 1.0
        %v1116 = vrcp.pop %v1114
        %v1117 = vmul.f32 1.0, %v1116
        %v1118 = vrcp.pop %v1115
        %v1119 = vmul.f32 1.0, %v1118
        %v1122 = vcombine.low %v1117, %v1119
        %v1124 = vunpack.c.l.s4 1966171168
        %v1125 = vunpack.c.0.s8 %v1124
        %v1126 = vlaneseq
        %v1127 = vshrl.u32 %v1126, 7
        %v1128 = vsub.s32 %v1125, %v1127
        %v1129 = vrot.slane %v1122, %v1128
        %v1131 = vunpack.c.l.s4 1966171168
        %v1132 = vunpack.c.0.s8 %v1131
        %v1133 = vlaneseq
        %v1134 = vshrl.u32 %v1133, 7
        %v1135 = vsub.s32 %v1132, %v1134
        %v1136 = vrot.slane %v1129, %v1135
        %v1138 = vlaneseq
        %vm1139 = vcmp.ge.s32.totalorder %v1138, 0
        %vm1140 = vcmp.lt.s32.totalorder %v1138, 256
        %vm1141 = vmand %vm1139, %vm1140
        %1142 = vst.msk [vmem:[%s286] sm:$0x3] %vm1141, %v1136
        %s1143 = sand.u32 %s183, 1
        %s1144 = scalar_lea.sflag [#allocation4], %s1143
        %s1145 = sand.u32 %s183, 1
        %s1146 = smul.addr %s1145, 2
        %s1147 = scalar_lea.vmem [#allocation3], %s1146
        // Predicated region
        $region49: #{tpu_custom_call.1} parent=47 // pred_check
          %p1148 = pneg %p193
        $region50: #{tpu_custom_call.1} parent=47 // pred_check_branch
          %1150 = sbr.rel (%p1148) target = $region52
        $region51: #{tpu_custom_call.1} parent=47 // pred_region
          %s1151 = smul.u32 2, %s23
          %s1152 = ssub.s32 3, %s1151
          %p1153 = scmp.lt.s32.totalorder %s1152, 2
          %s1154 = scalar_select %p1153, %s1152, 2
          %s1155 = smul.u32 16, %s1154
          %s1157 = ssub.s32 32, %s1155
          %1158 = vsyncadd %s1144, %s1157
          %p1159 = scmp.ne.s32.totalorder 0, %s1155
          %s1160 = smul.addr %s1151, 16
          %s1161 = scalar_lea.hbm %s7, %s1160
          %s1162 = sshll.u32 %s1154, 4
          %s1163 = sshll.u32 %s1147, 4
          %s1164 = int_to_ptr.vmem [resolvable:$true] %s1163
          %1166 = dma.vmem_to_hbm [thread:$0]  (%p1159), %s1164, %s1162, %s1161, %s1144
        $region52: #{tpu_custom_call.1} parent=47 // pred_fallthru
          _
      $region48: #{tpu_custom_call.1} parent=5 // pred_fallthru
        _
      %p1167 = scmp.le.s32.totalorder 2, %s18
      // Predicated region
      $region53: #{tpu_custom_call.1} parent=5 // pred_check
        %p1168 = pneg %p1167
      $region54: #{tpu_custom_call.1} parent=5 // pred_check_branch
        %1170 = sbr.rel (%p1168) target = $region56
      $region55: #{tpu_custom_call.1} parent=5 // pred_region
        %s1171 = ssub.s32 %s18, 2
        // Predicated region
        $region57: #{tpu_custom_call.1} parent=55 // pred_check
          %p1172 = pneg %p199
        $region58: #{tpu_custom_call.1} parent=55 // pred_check_branch
          %1174 = sbr.rel (%p1172) target = $region60
        $region59: #{tpu_custom_call.1} parent=55 // pred_region
          %s1175 = sand.u32 %s184, 1
          %s1176 = scalar_lea.sflag [#allocation4], %s1175
          %s1177 = sand.u32 %s184, 1
          %s1178 = smul.addr %s1177, 2
          %s1179 = scalar_lea.vmem [#allocation3], %s1178
          %1180 = dma.done %s1176, 32
        $region60: #{tpu_custom_call.1} parent=55 // pred_fallthru
          _
      $region56: #{tpu_custom_call.1} parent=5 // pred_fallthru
        _
    $region6: #{tpu_custom_call.1} parent=1 // loop_footer
      %s22 = sadd.s32 1, %s18
    $region7: #{tpu_custom_call.1} parent=1 // loop_footer_branch
      %17 = sbr.rel target = $region3
    $region8: #{tpu_custom_call.1} parent=1 // loop_exit
      _
    %1181 = vsyncpa [#allocation4], 1
    %s1182 = scalar_lea.sflag [#allocation4], 1
    %1183 = vsyncpa %s1182, 1

</llo_original>
